<compile_context>
chip_gen: v5e
topology: v5e:2x2
jax: 0.10.0
libtpu: 0.0.40
codegen_flags: <defaults>
</compile_context>

<pallas_src>
import jax
import jax.numpy as jnp
from jax.experimental import pallas as pl
from jax.experimental.pallas import tpu as pltpu


# ----------------------------------------------------------------------------- kernel
def gru_seq_kernel(xs_ref, h0_ref, wi_ref, wh_ref, bi_ref, bhn_ref, out_ref):
    """Full T-step GRU recurrence in one kernel invocation.

    xs_ref  : (T*B, E)  f32  all timestep inputs, flattened
    h0_ref  : (B, H)    f32  initial hidden state
    wi_ref  : (E, 3H)   f32  [W_ir | W_iz | W_in]   (stored (in, out))
    wh_ref  : (H, 3H)   f32  [W_hr | W_hz | W_hn]
    bi_ref  : (1, 3H)   f32  [b_ir + b_hr | b_iz + b_hz | b_in]
    bhn_ref : (1, H)    f32  b_hn (kept separate: n = tanh(gi_n + r*(h@W_hn + b_hn)))
    out_ref : (T*B, H)  f32  hidden state after every step
    """
    B, H = h0_ref.shape
    TB = xs_ref.shape[0]
    T = TB // B

    # ---- prologue (off the serial path): input projection for ALL timesteps at once ----
    gi_all = jnp.dot(xs_ref[...], wi_ref[...],
                     preferred_element_type=jnp.float32) + bi_ref[...]       # (T*B, 3H)

    wh = wh_ref[...]                                   # loaded once, resident across the loop
    bhn = jnp.broadcast_to(bhn_ref[...], (B, H))       # broadcast hoisted out of the loop
    h = h0_ref[...]                                    # f32 carry

    # ---- serial recurrence: only h @ Wh + gate math per step ----
    # T is small and static: a fully-unrolled static loop keeps every slice index static
    # (no dynamic sublane addressing) and gives the scheduler full cross-step visibility.
    for t in range(T):
        gi = gi_all[t * B:(t + 1) * B, :]                                    # (B, 3H)
        gh = jnp.dot(h, wh, preferred_element_type=jnp.float32)             # (B, 3H), 1 RHS tile
        rz = jax.nn.sigmoid(gi[:, :2 * H] + gh[:, :2 * H])                  # [r | z]
        r = rz[:, :H]
        z = rz[:, H:]
        n = jnp.tanh(gi[:, 2 * H:] + r * (gh[:, 2 * H:] + bhn))
        h = n + z * (h - n)                                                  # == (1-z)*n + z*h
        out_ref[t * B:(t + 1) * B, :] = h


# ----------------------------------------------------------------------------- wrappers
def pack_gru_params(params):
    """One-time transform: concat per-gate weights (order r,z,n), fold b_hr/b_hz into bi."""
    wi = jnp.concatenate([params["w_ir"], params["w_iz"], params["w_in"]], axis=1)   # (E, 3H)
    wh = jnp.concatenate([params["w_hr"], params["w_hz"], params["w_hn"]], axis=1)   # (H, 3H)
    bi = jnp.concatenate([params["b_ir"] + params["b_hr"],
                          params["b_iz"] + params["b_hz"],
                          params["b_in"]], axis=1)                                   # (1, 3H)
    bhn = params["b_hn"]                                                             # (1, H)
    return dict(wi=wi.astype(jnp.float32), wh=wh.astype(jnp.float32),
                bi=bi.astype(jnp.float32), bhn=bhn.astype(jnp.float32),
                H=params["w_hr"].shape[0])


def gru_seq_pallas(xs, h0, packed):
    """Run T GRU steps in one pallas_call. xs: (T, B, E), h0: (B, H) -> (T, B, H)."""
    T, B, E = xs.shape
    H = packed["H"]
    # Whole working set (xs + weights + outputs) is a few KB -> fully VMEM-resident.
    # TODO(synk): add a T-tiling grid axis if seq_len ever grows large enough to matter for VMEM.
    xs_flat = xs.reshape(T * B, E).astype(jnp.float32)
    h0 = h0.astype(jnp.float32)

    in_specs = [pl.BlockSpec(memory_space=pltpu.MemorySpace.VMEM) for _ in range(6)]
    out_flat = pl.pallas_call(
        gru_seq_kernel,
        out_shape=jax.ShapeDtypeStruct((T * B, H), jnp.float32),
        in_specs=in_specs,
        out_specs=pl.BlockSpec(memory_space=pltpu.MemorySpace.VMEM),
    )(xs_flat, h0, packed["wi"], packed["wh"], packed["bi"], packed["bhn"])
    return out_flat.reshape(T, B, H)


def dnetwork_seq2seq_forward(x, h, packed):
    """Matches DNetwork_Seq2seq.forward(input, hidden): a single GRUCell step."""
    return gru_seq_pallas(x[None], h, packed)[0]


# ----------------------------------------------------------------------------- init / reference
def init_gru_params(key, input_size, hidden_size, dtype=jnp.float32):
    """PyTorch-style init U(-1/sqrt(H), 1/sqrt(H)); weights stored transposed (in, out)."""
    bound = 1.0 / (hidden_size ** 0.5)
    names = ["w_ir", "w_iz", "w_in", "w_hr", "w_hz", "w_hn",
             "b_ir", "b_iz", "b_in", "b_hr", "b_hz", "b_hn"]
    keys = jax.random.split(key, len(names))
    params = {}
    for k, name in zip(keys, names):
        if name.startswith("w_i"):
            shape = (input_size, hidden_size)
        elif name.startswith("w_h"):
            shape = (hidden_size, hidden_size)
        else:
            shape = (1, hidden_size)
        params[name] = jax.random.uniform(k, shape, dtype, minval=-bound, maxval=bound)
    return params


def gru_cell_ref(x, h, p):
    r = jax.nn.sigmoid(x @ p["w_ir"] + p["b_ir"] + h @ p["w_hr"] + p["b_hr"])
    z = jax.nn.sigmoid(x @ p["w_iz"] + p["b_iz"] + h @ p["w_hz"] + p["b_hz"])
    n = jnp.tanh(x @ p["w_in"] + p["b_in"] + r * (h @ p["w_hn"] + p["b_hn"]))
    return (1.0 - z) * n + z * h


def gru_seq_ref(xs, h0, p):
    def step(h, x):
        h = gru_cell_ref(x, h, p)
        return h, h
    _, hs = jax.lax.scan(step, h0, xs)
    return hs


# ----------------------------------------------------------------------------- demo
if __name__ == "__main__":
    batch = 2
    embedding_size = 32   # lexicon_encoder.embedding_dim
    hidden_size = 32      # query_understand.output_size
    seq_len = 8           # decode steps, amortized inside a single pallas_call

    key = jax.random.PRNGKey(0)
    k_x, k_h, k_p = jax.random.split(key, 3)

    params = init_gru_params(k_p, embedding_size, hidden_size)
    packed = pack_gru_params(params)

    # ---- single step: exactly the module's forward(input, hidden) ----
    x = jax.random.normal(k_x, (batch, embedding_size), jnp.float32)
    h = jax.random.normal(k_h, (batch, hidden_size), jnp.float32)  # exercise z*h path
    out = jax.block_until_ready(dnetwork_seq2seq_forward(x, h, packed))
    ref = gru_cell_ref(x, h, params)
    assert out.shape == (batch, hidden_size)
    assert jnp.allclose(out, ref, atol=2e-4, rtol=2e-4), "single-step GRUCell mismatch"

    # ---- T-step recurrence fused into one kernel (initHidden -> zeros) ----
    xs = jax.random.normal(k_x, (seq_len, batch, embedding_size), jnp.float32)
    h0 = jnp.zeros((batch, hidden_size), jnp.float32)  # initHidden(batch_size)
    outs = jax.block_until_ready(gru_seq_pallas(xs, h0, packed))
    refs = gru_seq_ref(xs, h0, params)
    assert outs.shape == (seq_len, batch, hidden_size)
    assert jnp.allclose(outs, refs, atol=2e-4, rtol=2e-4), "sequence GRU mismatch"

    # TODO(synk): add_fact_memory / _get_doc_sentence_embeddings do data-dependent Python
    # string tokenization of doc ids and are not part of forward(); not ported to Pallas.
    print("KERNEL_OK")
</pallas_src>

<mosaic_0001>
module attributes {stable_mosaic.version = 11 : i64} {
  func.func @gru_seq_kernel(%arg0: memref<2x32xf32, #tpu.memory_space<vmem>>, %arg1: memref<2x32xf32, #tpu.memory_space<vmem>>, %arg2: memref<32x96xf32, #tpu.memory_space<vmem>>, %arg3: memref<32x96xf32, #tpu.memory_space<vmem>>, %arg4: memref<1x96xf32, #tpu.memory_space<vmem>>, %arg5: memref<1x32xf32, #tpu.memory_space<vmem>>, %arg6: memref<2x32xf32, #tpu.memory_space<vmem>>) attributes {dimension_semantics = [], scalar_prefetch = 0 : i64, scratch_operands = 0 : i64, tpu.core_type = #tpu.core_type<tc>} {
    %c0 = arith.constant 0 : index
    %c0_0 = arith.constant 0 : index
    %0 = vector.load %arg0[%c0, %c0_0] : memref<2x32xf32, #tpu.memory_space<vmem>>, vector<2x32xf32>
    %c0_1 = arith.constant 0 : index
    %c0_2 = arith.constant 0 : index
    %1 = vector.load %arg2[%c0_1, %c0_2] : memref<32x96xf32, #tpu.memory_space<vmem>>, vector<32x96xf32>
    %cst = arith.constant dense<0.000000e+00> : vector<2x96xf32>
    %2 = tpu.matmul %0, %1, %cst {dimension_numbers = #tpu.dot_dimension_numbers<[1], [0], [0], [1], [0, 0, 1, 1], [], []>} : vector<2x32xf32>, vector<32x96xf32>, vector<2x96xf32> -> vector<2x96xf32>
    %c0_3 = arith.constant 0 : index
    %c0_4 = arith.constant 0 : index
    %3 = vector.load %arg4[%c0_3, %c0_4] : memref<1x96xf32, #tpu.memory_space<vmem>>, vector<1x96xf32>
    %4 = vector.broadcast %3 : vector<1x96xf32> to vector<2x96xf32>
    %5 = arith.addf %2, %4 : vector<2x96xf32>
    %c0_5 = arith.constant 0 : index
    %c0_6 = arith.constant 0 : index
    %6 = vector.load %arg3[%c0_5, %c0_6] : memref<32x96xf32, #tpu.memory_space<vmem>>, vector<32x96xf32>
    %c0_7 = arith.constant 0 : index
    %c0_8 = arith.constant 0 : index
    %7 = vector.load %arg5[%c0_7, %c0_8] : memref<1x32xf32, #tpu.memory_space<vmem>>, vector<1x32xf32>
    %8 = vector.shape_cast %7 : vector<1x32xf32> to vector<1x32xf32>
    %9 = vector.broadcast %8 : vector<1x32xf32> to vector<2x32xf32>
    %c0_9 = arith.constant 0 : index
    %c0_10 = arith.constant 0 : index
    %10 = vector.load %arg1[%c0_9, %c0_10] : memref<2x32xf32, #tpu.memory_space<vmem>>, vector<2x32xf32>
    %cst_11 = arith.constant dense<0.000000e+00> : vector<2x96xf32>
    %11 = tpu.matmul %10, %6, %cst_11 {dimension_numbers = #tpu.dot_dimension_numbers<[1], [0], [0], [1], [0, 0, 1, 1], [], []>} : vector<2x32xf32>, vector<32x96xf32>, vector<2x96xf32> -> vector<2x96xf32>
    %12 = vector.extract_strided_slice %5 {offsets = [0, 0], sizes = [2, 64], strides = [1, 1]} : vector<2x96xf32> to vector<2x64xf32>
    %13 = vector.extract_strided_slice %11 {offsets = [0, 0], sizes = [2, 64], strides = [1, 1]} : vector<2x96xf32> to vector<2x64xf32>
    %14 = arith.addf %12, %13 : vector<2x64xf32>
    %15 = arith.negf %14 : vector<2x64xf32>
    %16 = math.exp %15 : vector<2x64xf32>
    %cst_12 = arith.constant 1.000000e+00 : f32
    %17 = vector.broadcast %cst_12 : f32 to vector<2x64xf32>
    %18 = arith.addf %17, %16 : vector<2x64xf32>
    %19 = arith.divf %17, %18 : vector<2x64xf32>
    %20 = vector.extract_strided_slice %19 {offsets = [0, 0], sizes = [2, 32], strides = [1, 1]} : vector<2x64xf32> to vector<2x32xf32>
    %21 = vector.extract_strided_slice %19 {offsets = [0, 32], sizes = [2, 32], strides = [1, 1]} : vector<2x64xf32> to vector<2x32xf32>
    %22 = vector.extract_strided_slice %5 {offsets = [0, 64], sizes = [2, 32], strides = [1, 1]} : vector<2x96xf32> to vector<2x32xf32>
    %23 = vector.extract_strided_slice %11 {offsets = [0, 64], sizes = [2, 32], strides = [1, 1]} : vector<2x96xf32> to vector<2x32xf32>
    %24 = arith.addf %23, %9 : vector<2x32xf32>
    %25 = arith.mulf %20, %24 : vector<2x32xf32>
    %26 = arith.addf %22, %25 : vector<2x32xf32>
    %27 = math.tanh %26 : vector<2x32xf32>
    %28 = arith.subf %10, %27 : vector<2x32xf32>
    %29 = arith.mulf %21, %28 : vector<2x32xf32>
    %30 = arith.addf %27, %29 : vector<2x32xf32>
    %c0_13 = arith.constant 0 : index
    %c0_14 = arith.constant 0 : index
    %31 = vector.load %arg6[%c0_13, %c0_14] : memref<2x32xf32, #tpu.memory_space<vmem>>, vector<2x32xf32>
    tpu.vector_store %arg6[%c0_13, %c0_14], %30 {strides = array<i32>} : memref<2x32xf32, #tpu.memory_space<vmem>>, vector<2x32xf32>,
    return
  }
}

</mosaic_0001>

<llo_original>
// kernel: tpu_custom_call.1
$region0: #{tpu_custom_call.1}
  #allocation0 [shape = 'u32[]', space=smem, size = 0x4, offset = 0x4, fixed_abs, tag = 'smem constant byte address 0x4 - core index']
  #allocation1 [shape = 'u32[72,128]{1,0:T(1,128)}', space=vmem, size = 0x9000, scoped, tag = 'internal scratch']
  %s0 = inlined_call_operand.hbm [shape: f32[2,32], index: 0, kind: input, shape index: {}]
  %s1 = inlined_call_operand.hbm [shape: f32[2,32], index: 1, kind: input, shape index: {}]
  %s2 = inlined_call_operand.hbm [shape: f32[32,96], index: 2, kind: input, shape index: {}]
  %s3 = inlined_call_operand.hbm [shape: f32[32,96], index: 3, kind: input, shape index: {}]
  %s4 = inlined_call_operand.vmem [shape: f32[1,96], index: 4, kind: input, shape index: {}]
  %s5 = inlined_call_operand.vmem [shape: f32[1,32], index: 5, kind: input, shape index: {}]
  %s6 = inlined_call_operand.hbm [shape: f32[2,32], index: 6, kind: output, shape index: {}]
  %s7 = sld [smem:[#allocation0]]
  $region50: #{tpu_custom_call.1} parent=0
    _
  %s9 = ssub.s32 1, %s7
  %s10 = scalar_select 0, %s9, %s7
  $region1: #{tpu_custom_call.1} parent=0
    #allocation2 [shape = 'u8[1024]{0}', space=vmem, size = 0x400, scoped, tag = 'input window, operand 0, single buffered']
    #allocation3 [shape = 's32[1]{0}', space=sflag, size = 0x4, scoped, tag = 'scoped memory for tpu_custom_call.1']
    #allocation4 [shape = 's32[1]{0}', space=sflag, size = 0x4, scoped, tag = 'scoped memory for tpu_custom_call.1']
    #allocation5 [shape = 'u8[1024]{0}', space=vmem, size = 0x400, scoped, tag = 'input window, operand 1, single buffered']
    #allocation6 [shape = 's32[1]{0}', space=sflag, size = 0x4, scoped, tag = 'scoped memory for tpu_custom_call.1']
    #allocation7 [shape = 'u8[16384]{0}', space=vmem, size = 0x4000, scoped, tag = 'input window, operand 2, single buffered']
    #allocation8 [shape = 'u8[16384]{0}', space=vmem, size = 0x4000, scoped, tag = 'input window, operand 3, single buffered']
    #allocation9 [shape = 's32[1]{0}', space=sflag, size = 0x4, scoped, tag = 'scoped memory for tpu_custom_call.1']
    #allocation10 [shape = 'u8[1024]{0}', space=vmem, size = 0x400, scoped, tag = 'output window, operand 0, single buffered']
    %11 = vsyncpa [#allocation3], 0
    %12 = vsyncpa [#allocation6], 0
    %13 = vsyncpa [#allocation9], 0
    %14 = vsyncpa [#allocation4], 0
    // Predicated region
    $region2: #{tpu_custom_call.1} parent=1 // pred_check
      _
    $region3: #{tpu_custom_call.1} parent=1 // pred_check_branch
      %16 = sbr.rel (0) target = $region5
    $region4: #{tpu_custom_call.1} parent=1 // pred_region
      %18 = vsyncadd [#allocation3], 0
      %s20 = sshll.u32 %s0, 4
      %s21 = int_to_ptr.hbm [resolvable:$true] %s20
      %s22 = sshll.u32 [#allocation2], 4
      %s23 = int_to_ptr.vmem [resolvable:$true] %s22
      %25 = dma.hbm_to_vmem [thread:$0]  %s21, 32, %s23, [#allocation3]
    $region5: #{tpu_custom_call.1} parent=1 // pred_fallthru
      _
    // Predicated region
    $region6: #{tpu_custom_call.1} parent=1 // pred_check
      _
    $region7: #{tpu_custom_call.1} parent=1 // pred_check_branch
      %27 = sbr.rel (0) target = $region9
    $region8: #{tpu_custom_call.1} parent=1 // pred_region
      %29 = vsyncadd [#allocation6], 0
      %s31 = sshll.u32 %s1, 4
      %s32 = int_to_ptr.hbm [resolvable:$true] %s31
      %s33 = sshll.u32 [#allocation5], 4
      %s34 = int_to_ptr.vmem [resolvable:$true] %s33
      %36 = dma.hbm_to_vmem [thread:$0]  %s32, 32, %s34, [#allocation6]
    $region9: #{tpu_custom_call.1} parent=1 // pred_fallthru
      _
    // Predicated region
    $region10: #{tpu_custom_call.1} parent=1 // pred_check
      _
    $region11: #{tpu_custom_call.1} parent=1 // pred_check_branch
      %38 = sbr.rel (0) target = $region13
    $region12: #{tpu_custom_call.1} parent=1 // pred_region
      %40 = vsyncadd [#allocation6], 0
      %s41 = sshll.u32 %s2, 4
      %s42 = int_to_ptr.hbm [resolvable:$true] %s41
      %s43 = sshll.u32 [#allocation7], 4
      %s44 = int_to_ptr.vmem [resolvable:$true] %s43
      %49 = dma.hbm_to_vmem [thread:$0]  %s42, 512, %s44, [#allocation6], 128, 128, 8
    $region13: #{tpu_custom_call.1} parent=1 // pred_fallthru
      _
    // Predicated region
    $region14: #{tpu_custom_call.1} parent=1 // pred_check
      _
    $region15: #{tpu_custom_call.1} parent=1 // pred_check_branch
      %51 = sbr.rel (0) target = $region17
    $region16: #{tpu_custom_call.1} parent=1 // pred_region
      %53 = vsyncadd [#allocation9], 0
      %s54 = sshll.u32 %s3, 4
      %s55 = int_to_ptr.hbm [resolvable:$true] %s54
      %s56 = sshll.u32 [#allocation8], 4
      %s57 = int_to_ptr.vmem [resolvable:$true] %s56
      %62 = dma.hbm_to_vmem [thread:$0]  %s55, 512, %s57, [#allocation9], 128, 128, 8
    $region17: #{tpu_custom_call.1} parent=1 // pred_fallthru
      _
    // Predicated region
    $region18: #{tpu_custom_call.1} parent=1 // pred_check
      _
    $region19: #{tpu_custom_call.1} parent=1 // pred_check_branch
      %64 = sbr.rel (0) target = $region21
    $region20: #{tpu_custom_call.1} parent=1 // pred_region
      _
    $region21: #{tpu_custom_call.1} parent=1 // pred_fallthru
      _
    // Predicated region
    $region22: #{tpu_custom_call.1} parent=1 // pred_check
      _
    $region23: #{tpu_custom_call.1} parent=1 // pred_check_branch
      %66 = sbr.rel (0) target = $region25
    $region24: #{tpu_custom_call.1} parent=1 // pred_region
      _
    $region25: #{tpu_custom_call.1} parent=1 // pred_fallthru
      _
    // Predicated region
    $region26: #{tpu_custom_call.1} parent=1 // pred_check
      _
    $region27: #{tpu_custom_call.1} parent=1 // pred_check_branch
      %68 = sbr.rel (0) target = $region29
    $region28: #{tpu_custom_call.1} parent=1 // pred_region
      %70 = dma.done [#allocation3], 32
    $region29: #{tpu_custom_call.1} parent=1 // pred_fallthru
      _
    // Predicated region
    $region30: #{tpu_custom_call.1} parent=1 // pred_check
      _
    $region31: #{tpu_custom_call.1} parent=1 // pred_check_branch
      %72 = sbr.rel (0) target = $region33
    $region32: #{tpu_custom_call.1} parent=1 // pred_region
      %74 = dma.done [#allocation6], 32
    $region33: #{tpu_custom_call.1} parent=1 // pred_fallthru
      _
    // Predicated region
    $region34: #{tpu_custom_call.1} parent=1 // pred_check
      _
    $region35: #{tpu_custom_call.1} parent=1 // pred_check_branch
      %76 = sbr.rel (0) target = $region37
    $region36: #{tpu_custom_call.1} parent=1 // pred_region
      %78 = dma.done [#allocation6], 512
    $region37: #{tpu_custom_call.1} parent=1 // pred_fallthru
      _
    // Predicated region
    $region38: #{tpu_custom_call.1} parent=1 // pred_check
      _
    $region39: #{tpu_custom_call.1} parent=1 // pred_check_branch
      %80 = sbr.rel (0) target = $region41
    $region40: #{tpu_custom_call.1} parent=1 // pred_region
      %82 = dma.done [#allocation9], 512
    $region41: #{tpu_custom_call.1} parent=1 // pred_fallthru
      _
    %v83 = vld [vmem:[#allocation2] sm:$0x3]
    %v84 = vld [vmem:[#allocation7] sm:$0xff]
    %v85 = vld [vmem:[#allocation7 + $0x8] sm:$0xff]
    %v86 = vld [vmem:[#allocation7 + $0x10] sm:$0xff]
    %v87 = vld [vmem:[#allocation7 + $0x18] sm:$0xff]
    %v88 = vld [vmem:[%s4] sm:$0x1]
    %v90 = vperm.slane %v88, 0
    %vm92 = vcmask 261120
    %v94 = vsel %vm92, %v83, 0
    %96 = vmatpush.msra.mxu0 0.0
    %97 = vmatpush.msra.mxu0 0.0
    %98 = vmatpush.msra.mxu0 0.0
    %99 = vmatpush.msra.mxu0 0.0
    %100 = vmatpush.msra.mxu0 0.0
    %101 = vmatpush.msra.mxu0 0.0
    %102 = vmatpush.msra.mxu0 0.0
    %103 = vmatpush.msra.mxu0 0.0
    %104 = vmatpush.msra.mxu0 0.0
    %105 = vmatpush.msra.mxu0 0.0
    %106 = vmatpush.msra.mxu0 0.0
    %107 = vmatpush.msra.mxu0 0.0
    %108 = vmatpush.msra.mxu0 %v87
    %109 = vmatpush.msra.mxu0 %v86
    %110 = vmatpush.msra.mxu0 %v85
    %111 = vmatpush.msra.mxu0 %v84
    %112 = vmatmul.f32.gmra.mxu0 %v94
    %v113 = vpop.f32.mrf.mxu0
    %v114 = vadd.f32 %v90, %v113
    %115 = vdwg.mxu0
    %v116 = vld [vmem:[#allocation8] sm:$0xff]
    %v117 = vld [vmem:[#allocation8 + $0x8] sm:$0xff]
    %v118 = vld [vmem:[#allocation8 + $0x10] sm:$0xff]
    %v119 = vld [vmem:[#allocation8 + $0x18] sm:$0xff]
    %v120 = vld [vmem:[%s5] sm:$0x1]
    %v122 = vperm.slane %v120, 0
    %v123 = vld [vmem:[#allocation5] sm:$0x3]
    %v125 = vsel %vm92, %v123, 0
    %127 = vmatpush.msra.mxu0 0.0
    %128 = vmatpush.msra.mxu0 0.0
    %129 = vmatpush.msra.mxu0 0.0
    %130 = vmatpush.msra.mxu0 0.0
    %131 = vmatpush.msra.mxu0 0.0
    %132 = vmatpush.msra.mxu0 0.0
    %133 = vmatpush.msra.mxu0 0.0
    %134 = vmatpush.msra.mxu0 0.0
    %135 = vmatpush.msra.mxu0 0.0
    %136 = vmatpush.msra.mxu0 0.0
    %137 = vmatpush.msra.mxu0 0.0
    %138 = vmatpush.msra.mxu0 0.0
    %139 = vmatpush.msra.mxu0 %v119
    %140 = vmatpush.msra.mxu0 %v118
    %141 = vmatpush.msra.mxu0 %v117
    %142 = vmatpush.msra.mxu0 %v116
    %143 = vmatmul.f32.gmra.mxu0 %v125
    %v144 = vpop.f32.mrf.mxu0
    %v145 = vadd.f32 0.0, %v144
    %146 = vdwg.mxu0
    %v147 = vadd.f32 %v114, %v145
    %v148 = vxor.u32 %v147, 2147483648
    %v149 = vmul.f32 %v148, 1.442695
    %v150 = vpow.pop %v149
    %v151 = vadd.f32 %v150, 1.0
    %v152 = vrcp.pop %v151
    %v153 = vmul.f32 %v151, %v152
    %v154 = vsub.f32 1.0, %v153
    %v155 = vmul.f32 %v152, %v154
    %v156 = vadd.f32 %v152, %v155
    %vm157 = vweird.f32 %v151
    %vm158 = vweird.f32 %v152
    %vm159 = vmor %vm157, %vm158
    %v160 = vsel %vm159, %v152, %v156
    %v161 = vand.u32 2147483647, %v151
    %vm162 = vcmp.eq.f32.partialorder %v161, 8.507059e+37
    %v163 = vand.u32 %v151, 2147483648
    %v164 = vor.u32 1.1754944e-38, %v163
    %v165 = vsel %vm162, %v164, %v160
    %v166 = vmul.f32 1.0, %v165
    %167 = vrot.lane.b32.xlu0 %v122, 64
    %v168 = vpop.permute.xlu0 %167
    %v170 = vadd.f32 %v145, %v168
    %172 = vrot.lane.b32.xlu0 %v170, 64
    %v173 = vpop.permute.xlu0 %172
    %v175 = vmul.f32 %v166, %v173
    %177 = vrot.lane.b32.xlu0 %v175, 64
    %v178 = vpop.permute.xlu0 %177
    %v180 = vadd.f32 %v114, %v178
    %v181 = vtanh.pop %v180
    %183 = vrot.lane.b32.xlu0 %v181, 64
    %v184 = vpop.permute.xlu0 %183
    %v186 = vsub.f32 %v123, %v184
    %188 = vrot.lane.b32.xlu0 %v186, 32
    %v189 = vpop.permute.xlu0 %188
    %v191 = vmul.f32 %v166, %v189
    %193 = vrot.lane.b32.xlu0 %v191, 32
    %v194 = vpop.permute.xlu0 %193
    %v196 = vadd.f32 %v181, %v194
    %198 = vrot.lane.b32.xlu0 %v196, 64
    %v199 = vpop.permute.xlu0 %198
    %vm201 = vcmask 254976
    %202 = vst.msk [vmem:[#allocation10] sm:$0x3] %vm201, %v199
    // Predicated region
    $region42: #{tpu_custom_call.1} parent=1 // pred_check
      _
    $region43: #{tpu_custom_call.1} parent=1 // pred_check_branch
      %204 = sbr.rel (0) target = $region45
    $region44: #{tpu_custom_call.1} parent=1 // pred_region
      %206 = vsyncadd [#allocation4], 0
      %s208 = sshll.u32 [#allocation10], 4
      %s209 = int_to_ptr.vmem [resolvable:$true] %s208
      %s210 = sshll.u32 %s6, 4
      %s211 = int_to_ptr.hbm [resolvable:$true] %s210
      %213 = dma.vmem_to_hbm [thread:$0]  %s209, 32, %s211, [#allocation4]
    $region45: #{tpu_custom_call.1} parent=1 // pred_fallthru
      _
    // Predicated region
    $region46: #{tpu_custom_call.1} parent=1 // pred_check
      _
    $region47: #{tpu_custom_call.1} parent=1 // pred_check_branch
      %215 = sbr.rel (0) target = $region49
    $region48: #{tpu_custom_call.1} parent=1 // pred_region
      %217 = dma.done [#allocation4], 32
    $region49: #{tpu_custom_call.1} parent=1 // pred_fallthru
      _
    %218 = vsyncpa [#allocation3], 1
    %219 = vsyncpa [#allocation6], 1
    %220 = vsyncpa [#allocation9], 1
    %221 = vsyncpa [#allocation4], 1

</llo_original>
